<compile_context>
chip_gen: v7x
topology: tpu7x:2x2x1
jax: 0.10.0
libtpu: 0.0.40
codegen_flags: <defaults>
</compile_context>

<pallas_src>
import numpy as np
import jax
import jax.numpy as jnp
from jax.experimental import pallas as pl
from jax.experimental.pallas import tpu as pltpu

_SMOOTH = 1e-6
_LAMBDA_REGION = 0.8      # forward() hardcodes 0.8 / 0.2
_LAMBDA_DIS = 0.2

_VMEM_PIPE_BUDGET = 8 * 1024 * 1024     # double-buffered input working set
_VMEM_LIMIT = 40 * 1024 * 1024          # scoped VMEM limit (safe on v5e/v6e/v7x)
_MIN_STEP_BYTES = 1 * 1024 * 1024       # target per-grid-step input payload

# Degree-6 least-squares fit of log(1 + exp(-s)) for s in [0, 1], evaluated in
# u = 2s - 1 for conditioning.  Max abs error ~1e-8 (far below f32 rounding).
_u = np.linspace(-1.0, 1.0, 4097)
_SOFTPLUS_NEG_COEFFS = tuple(
    float(c) for c in np.polyfit(_u, np.log1p(np.exp(-0.5 * (_u + 1.0))), 6))
del _u


def _softplus_neg_poly(s):
    """log(1 + exp(-s)) for s in (0, 1) via Horner polynomial (no exp/log)."""
    u = 2.0 * s - 1.0
    acc = _SOFTPLUS_NEG_COEFFS[0]
    for c in _SOFTPLUS_NEG_COEFFS[1:]:
        acc = acc * u + c
    return acc


def _dice_ce_kernel(x_ref, y_ref, o_ref):
    x = x_ref[...].astype(jnp.float32)       # (bt, C, tm, 128)
    y = y_ref[...].astype(jnp.float32)
    s = jax.nn.sigmoid(x)                    # do_sigmoid=True path
    # Reference bce_loss() feeds sigmoid(x) into BCEWithLogitsLoss ("double
    # sigmoid").  With z = sigmoid(x) in (0,1): max(z,0)=z and |z|=z, so
    #   bce = z*(1-y) + log(1 + exp(-z)).
    bce = s * (1.0 - y) + _softplus_neg_poly(s)
    # Sublane-only reduction; cross-lane / cross-tile / cross-batch reduce is
    # deferred to the tiny JAX epilogue on the (B, Jt, 4, C, 128) partials.
    o_ref[:, 0, 0] = jnp.sum(s * y, axis=2)      # intersection      (bt, C, 128)
    o_ref[:, 0, 1] = jnp.sum(s * s, axis=2)      # sum sigmoid(x)^2
    o_ref[:, 0, 2] = jnp.sum(y * y, axis=2)      # sum target^2
    o_ref[:, 0, 3] = jnp.sum(bce, axis=2)        # BCE sum


def _stats_jax(x, y):
    """Exact (4, C) partial stats [inter, ssq, tsq, bce_sum] for (B, C, T) slices."""
    s = jax.nn.sigmoid(x.astype(jnp.float32))
    yf = y.astype(jnp.float32)
    inter = jnp.sum(s * yf, axis=(0, 2))
    ssq = jnp.sum(s * s, axis=(0, 2))
    tsq = jnp.sum(yf * yf, axis=(0, 2))
    bce = jnp.sum(s * (1.0 - yf) + jnp.log1p(jnp.exp(-s)), axis=(0, 2))
    return jnp.stack([inter, ssq, tsq, bce])


def dice_ce_loss(inputs, target, *, row_tile=1024):
    """inputs, target: (B, C, H, W); any float/int dtype (cast to f32 in-VMEM)."""
    B, C, H, W = inputs.shape
    assert target.shape == inputs.shape
    n_valid = H * W

    x_flat = inputs.reshape(B, C, n_valid)       # free views, no transpose/cast
    y_flat = target.reshape(B, C, n_valid)

    xb = inputs.dtype.itemsize
    yb = target.dtype.itemsize
    row_bytes = C * 128 * (xb + yb)              # one 128-lane row, both inputs

    # VMEM-derived cap on the row tile (2 inputs x 2 buffers <= budget).
    row_cap = max(8, (_VMEM_PIPE_BUDGET // (2 * row_bytes)) // 8 * 8)
    tm_cap = max(8, min(int(row_tile), row_cap) // 8 * 8)

    R = n_valid // 128                           # complete 128-lane rows per (b, c)
    totals = jnp.zeros((4, C), jnp.float32)
    n_main = 0

    if R > 0:
        if R <= tm_cap:
            tm, Jt = R, 1                        # block dim == full dim is legal
        else:
            Jt0 = pl.cdiv(R, tm_cap)
            tm = max(8, (R // Jt0) // 8 * 8)     # balanced, full-sublane tiles
            Jt = R // tm
        n_main = Jt * tm * 128                   # flat elements per (b, c) in kernel

        if Jt == 1:
            # Small-R shapes: pack several batch items per grid step so each
            # step still moves a decent DMA payload.
            per_b = C * tm * 128 * (xb + yb)
            bt_want = min(B,
                          max(1, _VMEM_PIPE_BUDGET // (2 * per_b)),
                          max(1, -(-_MIN_STEP_BYTES // per_b)))
            bt = max(d for d in range(1, bt_want + 1) if B % d == 0)
        else:
            bt = 1

        if n_valid % 128 == 0:
            x_main = x_flat.reshape(B, C, R, 128)        # free reshape
            y_main = y_flat.reshape(B, C, R, 128)
        else:
            # TODO(synk): this prefix slice materializes one copy when H*W is
            # not a multiple of 128; a pl.ANY manual-DMA path could remove it.
            x_main = x_flat[:, :, :n_main].reshape(B, C, Jt * tm, 128)
            y_main = y_flat[:, :, :n_main].reshape(B, C, Jt * tm, 128)

        stats = pl.pallas_call(
            _dice_ce_kernel,
            out_shape=jax.ShapeDtypeStruct((B, Jt, 4, C, 128), jnp.float32),
            grid_spec=pltpu.PrefetchScalarGridSpec(
                num_scalar_prefetch=0,
                grid=(B // bt, Jt),
                in_specs=[
                    pl.BlockSpec((bt, C, tm, 128), lambda bi, j: (bi, 0, j, 0)),
                    pl.BlockSpec((bt, C, tm, 128), lambda bi, j: (bi, 0, j, 0)),
                ],
                out_specs=pl.BlockSpec((bt, 1, 4, C, 128),
                                       lambda bi, j: (bi, j, 0, 0, 0)),
            ),
            compiler_params=pltpu.CompilerParams(
                dimension_semantics=("parallel", "parallel"),
                vmem_limit_bytes=_VMEM_LIMIT),
        )(x_main, y_main)

        totals = jnp.sum(stats, axis=(0, 1, 4))          # (4, C)

    if n_main < n_valid:
        # Ragged tail (leftover rows + partial 128-lane row): tiny, pure JAX.
        totals = totals + _stats_jax(x_flat[:, :, n_main:], y_flat[:, :, n_main:])

    inter, ssq, tsq, bce_sum = totals[0], totals[1], totals[2], totals[3]
    dice = (2.0 * inter + _SMOOTH) / (ssq + tsq + _SMOOTH)
    dice_loss = jnp.mean(1.0 - dice)
    bce_loss = jnp.sum(bce_sum) / (B * C * n_valid)
    return _LAMBDA_REGION * dice_loss + _LAMBDA_DIS * bce_loss


def _reference(inputs, target):
    """Pure-JAX transcription of the PyTorch forward pass."""
    s = jax.nn.sigmoid(inputs.astype(jnp.float32))
    y = target.astype(jnp.float32)
    C = y.shape[1]
    dice = 0.0
    for i in range(C):
        si, yi = s[:, i], y[:, i]
        inter = jnp.sum(si * yi)
        d = (2.0 * inter + _SMOOTH) / (jnp.sum(si * si) + jnp.sum(yi * yi) + _SMOOTH)
        dice = dice + (1.0 - d)
    dice_loss = dice / C
    z = s  # BCEWithLogitsLoss applied to already-sigmoided inputs (reference behavior)
    bce = jnp.maximum(z, 0.0) - z * y + jnp.log(1.0 + jnp.exp(-jnp.abs(z)))
    bce_loss = jnp.mean(bce)
    return _LAMBDA_REGION * dice_loss + _LAMBDA_DIS * bce_loss


if __name__ == "__main__":
    key = jax.random.PRNGKey(0)
    k1, k2, k3, k4, k5, k6 = jax.random.split(key, 6)

    # 1) Aligned (H*W % 128 == 0), single row tile, batch-blocked fast path.
    B, C, H, W = 2, 3, 16, 16                 # 3 channels: ET / TC / WT
    x = jax.random.normal(k1, (B, C, H, W), dtype=jnp.float32)
    y = (jax.random.uniform(k2, (B, C, H, W)) > 0.5).astype(jnp.float32)
    loss = dice_ce_loss(x, y)
    jax.block_until_ready(loss)
    ref = _reference(x, y)
    assert abs(float(loss) - float(ref)) < 1e-5, (float(loss), float(ref))

    # 2) Misaligned (H*W = 225): kernel handles the 128-aligned prefix; the
    #    97-element ragged tail per (b, c) is folded in by the JAX epilogue.
    x2 = jax.random.normal(k3, (2, 3, 15, 15), dtype=jnp.float32)
    y2 = (jax.random.uniform(k4, (2, 3, 15, 15)) > 0.5).astype(jnp.float32)
    loss2 = dice_ce_loss(x2, y2)
    jax.block_until_ready(loss2)
    ref2 = _reference(x2, y2)
    assert abs(float(loss2) - float(ref2)) < 1e-5, (float(loss2), float(ref2))

    # 3) Multi-tile grid (forced with a small row_tile), leftover full rows in
    #    the tail, and narrow bf16 inputs streamed straight into the kernel.
    x3 = jax.random.normal(k5, (2, 3, 48, 48), dtype=jnp.bfloat16)
    y3 = (jax.random.uniform(k6, (2, 3, 48, 48)) > 0.5).astype(jnp.bfloat16)
    loss3 = dice_ce_loss(x3, y3, row_tile=8)
    jax.block_until_ready(loss3)
    ref3 = _reference(x3, y3)
    assert abs(float(loss3) - float(ref3)) < 1e-5, (float(loss3), float(ref3))

    print("KERNEL_OK")
</pallas_src>

<mosaic_0001>
module attributes {stable_mosaic.version = 11 : i64} {
  func.func @_dice_ce_kernel(%arg0: i32, %arg1: i32, %arg2: memref<2x3x2x128xf32, #tpu.memory_space<vmem>>, %arg3: memref<2x3x2x128xf32, #tpu.memory_space<vmem>>, %arg4: memref<2x1x4x3x128xf32, #tpu.memory_space<vmem>>) attributes {dimension_semantics = [#tpu.dimension_semantics<parallel>, #tpu.dimension_semantics<parallel>], iteration_bounds = array<i64: 1, 1>, scalar_prefetch = 0 : i64, scratch_operands = 0 : i64, tpu.core_type = #tpu.core_type<tc>, window_params = [{transform_indices = @transform_0, window_bounds = array<i64: 2, 3, 2, 128>}, {transform_indices = @transform_1, window_bounds = array<i64: 2, 3, 2, 128>}, {transform_indices = @transform_2, window_bounds = array<i64: 2, 1, 4, 3, 128>}]} {
    %c0 = arith.constant 0 : index
    %c0_0 = arith.constant 0 : index
    %c0_1 = arith.constant 0 : index
    %c0_2 = arith.constant 0 : index
    %0 = vector.load %arg2[%c0, %c0_0, %c0_1, %c0_2] : memref<2x3x2x128xf32, #tpu.memory_space<vmem>>, vector<2x3x2x128xf32>
    %c0_3 = arith.constant 0 : index
    %c0_4 = arith.constant 0 : index
    %c0_5 = arith.constant 0 : index
    %c0_6 = arith.constant 0 : index
    %1 = vector.load %arg3[%c0_3, %c0_4, %c0_5, %c0_6] : memref<2x3x2x128xf32, #tpu.memory_space<vmem>>, vector<2x3x2x128xf32>
    %2 = arith.negf %0 : vector<2x3x2x128xf32>
    %3 = math.exp %2 : vector<2x3x2x128xf32>
    %cst = arith.constant 1.000000e+00 : f32
    %4 = vector.broadcast %cst : f32 to vector<2x3x2x128xf32>
    %5 = arith.addf %4, %3 : vector<2x3x2x128xf32>
    %6 = arith.divf %4, %5 : vector<2x3x2x128xf32>
    %cst_7 = arith.constant 1.000000e+00 : f32
    %7 = vector.broadcast %cst_7 : f32 to vector<2x3x2x128xf32>
    %8 = arith.subf %7, %1 : vector<2x3x2x128xf32>
    %9 = arith.mulf %6, %8 : vector<2x3x2x128xf32>
    %cst_8 = arith.constant 2.000000e+00 : f32
    %10 = vector.broadcast %cst_8 : f32 to vector<2x3x2x128xf32>
    %11 = arith.mulf %10, %6 : vector<2x3x2x128xf32>
    %cst_9 = arith.constant 1.000000e+00 : f32
    %12 = vector.broadcast %cst_9 : f32 to vector<2x3x2x128xf32>
    %13 = arith.subf %11, %12 : vector<2x3x2x128xf32>
    %cst_10 = arith.constant 2.89037234E-6 : f32
    %14 = vector.broadcast %cst_10 : f32 to vector<2x3x2x128xf32>
    %15 = arith.mulf %14, %13 : vector<2x3x2x128xf32>
    %cst_11 = arith.constant 2.63267884E-5 : f32
    %16 = vector.broadcast %cst_11 : f32 to vector<2x3x2x128xf32>
    %17 = arith.addf %15, %16 : vector<2x3x2x128xf32>
    %18 = arith.mulf %17, %13 : vector<2x3x2x128xf32>
    %cst_12 = arith.constant -2.50898593E-4 : f32
    %19 = vector.broadcast %cst_12 : f32 to vector<2x3x2x128xf32>
    %20 = arith.addf %18, %19 : vector<2x3x2x128xf32>
    %21 = arith.mulf %20, %13 : vector<2x3x2x128xf32>
    %cst_13 = arith.constant -1.198670e-03 : f32
    %22 = vector.broadcast %cst_13 : f32 to vector<2x3x2x128xf32>
    %23 = arith.addf %21, %22 : vector<2x3x2x128xf32>
    %24 = arith.mulf %23, %13 : vector<2x3x2x128xf32>
    %cst_14 = arith.constant 0.0293754581 : f32
    %25 = vector.broadcast %cst_14 : f32 to vector<2x3x2x128xf32>
    %26 = arith.addf %24, %25 : vector<2x3x2x128xf32>
    %27 = arith.mulf %26, %13 : vector<2x3x2x128xf32>
    %cst_15 = arith.constant -0.188770384 : f32
    %28 = vector.broadcast %cst_15 : f32 to vector<2x3x2x128xf32>
    %29 = arith.addf %27, %28 : vector<2x3x2x128xf32>
    %30 = arith.mulf %29, %13 : vector<2x3x2x128xf32>
    %cst_16 = arith.constant 4.740770e-01 : f32
    %31 = vector.broadcast %cst_16 : f32 to vector<2x3x2x128xf32>
    %32 = arith.addf %30, %31 : vector<2x3x2x128xf32>
    %33 = arith.addf %9, %32 : vector<2x3x2x128xf32>
    %34 = arith.mulf %6, %1 : vector<2x3x2x128xf32>
    %cst_17 = arith.constant dense<0.000000e+00> : vector<2x3x128xf32>
    %35 = vector.multi_reduction <add>, %34, %cst_17 [2] : vector<2x3x2x128xf32> to vector<2x3x128xf32>
    %c0_18 = arith.constant 0 : index
    %c0_19 = arith.constant 0 : index
    %c0_20 = arith.constant 0 : index
    %c0_21 = arith.constant 0 : index
    %c0_22 = arith.constant 0 : index
    %36 = vector.load %arg4[%c0_18, %c0_19, %c0_20, %c0_21, %c0_22] : memref<2x1x4x3x128xf32, #tpu.memory_space<vmem>>, vector<2x1x1x3x128xf32>
    %37 = vector.shape_cast %36 : vector<2x1x1x3x128xf32> to vector<2x3x128xf32>
    %38 = vector.shape_cast %35 : vector<2x3x128xf32> to vector<2x1x1x3x128xf32>
    tpu.vector_store %arg4[%c0_18, %c0_19, %c0_20, %c0_21, %c0_22], %38 {strides = array<i32>} : memref<2x1x4x3x128xf32, #tpu.memory_space<vmem>>, vector<2x1x1x3x128xf32>,
    %39 = arith.mulf %6, %6 : vector<2x3x2x128xf32>
    %cst_23 = arith.constant dense<0.000000e+00> : vector<2x3x128xf32>
    %40 = vector.multi_reduction <add>, %39, %cst_23 [2] : vector<2x3x2x128xf32> to vector<2x3x128xf32>
    %c0_24 = arith.constant 0 : index
    %c0_25 = arith.constant 0 : index
    %c1 = arith.constant 1 : index
    %c0_26 = arith.constant 0 : index
    %c0_27 = arith.constant 0 : index
    %41 = vector.load %arg4[%c0_24, %c0_25, %c1, %c0_26, %c0_27] : memref<2x1x4x3x128xf32, #tpu.memory_space<vmem>>, vector<2x1x1x3x128xf32>
    %42 = vector.shape_cast %41 : vector<2x1x1x3x128xf32> to vector<2x3x128xf32>
    %43 = vector.shape_cast %40 : vector<2x3x128xf32> to vector<2x1x1x3x128xf32>
    tpu.vector_store %arg4[%c0_24, %c0_25, %c1, %c0_26, %c0_27], %43 {strides = array<i32>} : memref<2x1x4x3x128xf32, #tpu.memory_space<vmem>>, vector<2x1x1x3x128xf32>,
    %44 = arith.mulf %1, %1 : vector<2x3x2x128xf32>
    %cst_28 = arith.constant dense<0.000000e+00> : vector<2x3x128xf32>
    %45 = vector.multi_reduction <add>, %44, %cst_28 [2] : vector<2x3x2x128xf32> to vector<2x3x128xf32>
    %c0_29 = arith.constant 0 : index
    %c0_30 = arith.constant 0 : index
    %c2 = arith.constant 2 : index
    %c0_31 = arith.constant 0 : index
    %c0_32 = arith.constant 0 : index
    %46 = vector.load %arg4[%c0_29, %c0_30, %c2, %c0_31, %c0_32] : memref<2x1x4x3x128xf32, #tpu.memory_space<vmem>>, vector<2x1x1x3x128xf32>
    %47 = vector.shape_cast %46 : vector<2x1x1x3x128xf32> to vector<2x3x128xf32>
    %48 = vector.shape_cast %45 : vector<2x3x128xf32> to vector<2x1x1x3x128xf32>
    tpu.vector_store %arg4[%c0_29, %c0_30, %c2, %c0_31, %c0_32], %48 {strides = array<i32>} : memref<2x1x4x3x128xf32, #tpu.memory_space<vmem>>, vector<2x1x1x3x128xf32>,
    %cst_33 = arith.constant dense<0.000000e+00> : vector<2x3x128xf32>
    %49 = vector.multi_reduction <add>, %33, %cst_33 [2] : vector<2x3x2x128xf32> to vector<2x3x128xf32>
    %c0_34 = arith.constant 0 : index
    %c0_35 = arith.constant 0 : index
    %c3 = arith.constant 3 : index
    %c0_36 = arith.constant 0 : index
    %c0_37 = arith.constant 0 : index
    %50 = vector.load %arg4[%c0_34, %c0_35, %c3, %c0_36, %c0_37] : memref<2x1x4x3x128xf32, #tpu.memory_space<vmem>>, vector<2x1x1x3x128xf32>
    %51 = vector.shape_cast %50 : vector<2x1x1x3x128xf32> to vector<2x3x128xf32>
    %52 = vector.shape_cast %49 : vector<2x3x128xf32> to vector<2x1x1x3x128xf32>
    tpu.vector_store %arg4[%c0_34, %c0_35, %c3, %c0_36, %c0_37], %52 {strides = array<i32>} : memref<2x1x4x3x128xf32, #tpu.memory_space<vmem>>, vector<2x1x1x3x128xf32>,
    return
  }
  func.func @transform_0(%arg0: i32, %arg1: i32) -> (i32, i32, i32, i32) {
    %c0_i32 = arith.constant 0 : i32
    %c0_i32_0 = arith.constant 0 : i32
    %c0_i32_1 = arith.constant 0 : i32
    return %arg0, %c0_i32, %arg1, %c0_i32_0 : i32, i32, i32, i32
  }
  func.func @transform_1(%arg0: i32, %arg1: i32) -> (i32, i32, i32, i32) {
    %c0_i32 = arith.constant 0 : i32
    %c0_i32_0 = arith.constant 0 : i32
    %c0_i32_1 = arith.constant 0 : i32
    return %arg0, %c0_i32, %arg1, %c0_i32_0 : i32, i32, i32, i32
  }
  func.func @transform_2(%arg0: i32, %arg1: i32) -> (i32, i32, i32, i32, i32) {
    %c0_i32 = arith.constant 0 : i32
    %c0_i32_0 = arith.constant 0 : i32
    %c0_i32_1 = arith.constant 0 : i32
    %c0_i32_2 = arith.constant 0 : i32
    return %arg0, %arg1, %c0_i32, %c0_i32_0, %c0_i32_1 : i32, i32, i32, i32, i32
  }
}

</mosaic_0001>

<llo_original>
// kernel: tpu_custom_call.1
$region0: #{tpu_custom_call.1}
  #allocation0 [shape = 'u32[]', space=smem, size = 0x4, offset = 0x4, fixed_abs, tag = 'smem constant byte address 0x4 - core index']
  #allocation1 [shape = 'u32[144,128]{1,0:T(1,128)}', space=vmem, size = 0x12000, scoped, tag = 'internal scratch']
  %s0 = inlined_call_operand.hbm [shape: f32[2,3,2,128], index: 0, kind: input, shape index: {}]
  %s1 = inlined_call_operand.hbm [shape: f32[2,3,2,128], index: 1, kind: input, shape index: {}]
  %s2 = inlined_call_operand.vmem [shape: f32[2,1,4,3,128], index: 2, kind: output, shape index: {}]
  %s3 = sld [smem:[#allocation0]]
  $region26: #{tpu_custom_call.1} parent=0
    _
  %s5 = ssub.s32 1, %s3
  %s6 = scalar_select 0, %s5, %s3
  $region1: #{tpu_custom_call.1} parent=0
    #allocation2 [shape = 'u8[6144]{0}', space=vmem, size = 0x1800, scoped, tag = 'input window, operand 0, single buffered']
    #allocation3 [shape = 's32[1]{0}', space=sflag, size = 0x4, scoped, tag = 'scoped memory for tpu_custom_call.1']
    #allocation4 [shape = 'u8[6144]{0}', space=vmem, size = 0x1800, scoped, tag = 'input window, operand 1, single buffered']
    #allocation5 [shape = 's32[1]{0}', space=sflag, size = 0x4, scoped, tag = 'scoped memory for tpu_custom_call.1']
    %7 = vsyncpa [#allocation3], 0
    %8 = vsyncpa [#allocation5], 0
    // Predicated region
    $region2: #{tpu_custom_call.1} parent=1 // pred_check
      _
    $region3: #{tpu_custom_call.1} parent=1 // pred_check_branch
      %10 = sbr.rel (0) target = $region5
    $region4: #{tpu_custom_call.1} parent=1 // pred_region
      %s12 = ssub.s32 192, 192
      %13 = vsyncadd [#allocation3], %s12
      %s14 = sshll.u32 [#allocation2], 4
      %s15 = int_to_ptr.vmem [resolvable:$true] %s14
      %20 = dma.hbm_to_vmem [thread:$0]  %s0, 192, %s15, [#allocation3], 32, 32, 2
    $region5: #{tpu_custom_call.1} parent=1 // pred_fallthru
      _
    // Predicated region
    $region6: #{tpu_custom_call.1} parent=1 // pred_check
      _
    $region7: #{tpu_custom_call.1} parent=1 // pred_check_branch
      %22 = sbr.rel (0) target = $region9
    $region8: #{tpu_custom_call.1} parent=1 // pred_region
      %s24 = ssub.s32 192, 192
      %25 = vsyncadd [#allocation5], %s24
      %s26 = sshll.u32 [#allocation4], 4
      %s27 = int_to_ptr.vmem [resolvable:$true] %s26
      %32 = dma.hbm_to_vmem [thread:$0]  %s1, 192, %s27, [#allocation5], 32, 32, 2
    $region9: #{tpu_custom_call.1} parent=1 // pred_fallthru
      _
    // Predicated region
    $region10: #{tpu_custom_call.1} parent=1 // pred_check
      _
    $region11: #{tpu_custom_call.1} parent=1 // pred_check_branch
      %34 = sbr.rel (0) target = $region13
    $region12: #{tpu_custom_call.1} parent=1 // pred_region
      %35 = dma.done [#allocation3], 192
    $region13: #{tpu_custom_call.1} parent=1 // pred_fallthru
      _
    // Predicated region
    $region14: #{tpu_custom_call.1} parent=1 // pred_check
      _
    $region15: #{tpu_custom_call.1} parent=1 // pred_check_branch
      %37 = sbr.rel (0) target = $region17
    $region16: #{tpu_custom_call.1} parent=1 // pred_region
      %38 = dma.done [#allocation5], 192
    $region17: #{tpu_custom_call.1} parent=1 // pred_fallthru
      _
    %v39 = vld [vmem:[#allocation2] sm:$0x3]
    %v40 = vld [vmem:[#allocation2 + $0x2] sm:$0x3]
    %v41 = vld [vmem:[#allocation2 + $0x4] sm:$0x3]
    %v42 = vld [vmem:[#allocation2 + $0x6] sm:$0x3]
    %v43 = vld [vmem:[#allocation2 + $0x8] sm:$0x3]
    %v44 = vld [vmem:[#allocation2 + $0xa] sm:$0x3]
    %v45 = vld [vmem:[#allocation4] sm:$0x3]
    %v46 = vld [vmem:[#allocation4 + $0x2] sm:$0x3]
    %v47 = vld [vmem:[#allocation4 + $0x4] sm:$0x3]
    %v48 = vld [vmem:[#allocation4 + $0x6] sm:$0x3]
    %v49 = vld [vmem:[#allocation4 + $0x8] sm:$0x3]
    %v50 = vld [vmem:[#allocation4 + $0xa] sm:$0x3]
    %v51 = vxor.u32 %v39, 2147483648
    %v52 = vxor.u32 %v40, 2147483648
    %v53 = vxor.u32 %v41, 2147483648
    %v54 = vxor.u32 %v42, 2147483648
    %v55 = vxor.u32 %v43, 2147483648
    %v56 = vxor.u32 %v44, 2147483648
    %v57 = vmul.f32 %v51, 1.442695
    %v58 = vpow.pop %v57
    %v59 = vmul.f32 %v52, 1.442695
    %v60 = vpow.pop %v59
    %v61 = vmul.f32 %v53, 1.442695
    %v62 = vpow.pop %v61
    %v63 = vmul.f32 %v54, 1.442695
    %v64 = vpow.pop %v63
    %v65 = vmul.f32 %v55, 1.442695
    %v66 = vpow.pop %v65
    %v67 = vmul.f32 %v56, 1.442695
    %v68 = vpow.pop %v67
    %v69 = vadd.f32 %v58, 1.0
    %v70 = vadd.f32 %v60, 1.0
    %v71 = vadd.f32 %v62, 1.0
    %v72 = vadd.f32 %v64, 1.0
    %v73 = vadd.f32 %v66, 1.0
    %v74 = vadd.f32 %v68, 1.0
    %v75 = vrcp.pop %v69
    %v76 = vmul.f32 1.0, %v75
    %v77 = vrcp.pop %v70
    %v78 = vmul.f32 1.0, %v77
    %v79 = vrcp.pop %v71
    %v80 = vmul.f32 1.0, %v79
    %v81 = vrcp.pop %v72
    %v82 = vmul.f32 1.0, %v81
    %v83 = vrcp.pop %v73
    %v84 = vmul.f32 1.0, %v83
    %v85 = vrcp.pop %v74
    %v86 = vmul.f32 1.0, %v85
    %v87 = vsub.f32 1.0, %v45
    %v88 = vsub.f32 1.0, %v46
    %v89 = vsub.f32 1.0, %v47
    %v90 = vsub.f32 1.0, %v48
    %v91 = vsub.f32 1.0, %v49
    %v92 = vsub.f32 1.0, %v50
    %v93 = vmul.f32 %v76, %v87
    %v94 = vmul.f32 %v78, %v88
    %v95 = vmul.f32 %v80, %v89
    %v96 = vmul.f32 %v82, %v90
    %v97 = vmul.f32 %v84, %v91
    %v98 = vmul.f32 %v86, %v92
    %v99 = vmul.f32 %v76, 2.0
    %v100 = vmul.f32 %v78, 2.0
    %v101 = vmul.f32 %v80, 2.0
    %v102 = vmul.f32 %v82, 2.0
    %v103 = vmul.f32 %v84, 2.0
    %v104 = vmul.f32 %v86, 2.0
    %v105 = vsub.f32 %v99, 1.0
    %v106 = vsub.f32 %v100, 1.0
    %v107 = vsub.f32 %v101, 1.0
    %v108 = vsub.f32 %v102, 1.0
    %v109 = vsub.f32 %v103, 1.0
    %v110 = vsub.f32 %v104, 1.0
    %v111 = vmul.f32 %v105, 2.8903723e-06
    %v112 = vmul.f32 %v106, 2.8903723e-06
    %v113 = vmul.f32 %v107, 2.8903723e-06
    %v114 = vmul.f32 %v108, 2.8903723e-06
    %v115 = vmul.f32 %v109, 2.8903723e-06
    %v116 = vmul.f32 %v110, 2.8903723e-06
    %v117 = vadd.f32 %v111, 2.6326788e-05
    %v118 = vadd.f32 %v112, 2.6326788e-05
    %v119 = vadd.f32 %v113, 2.6326788e-05
    %v120 = vadd.f32 %v114, 2.6326788e-05
    %v121 = vadd.f32 %v115, 2.6326788e-05
    %v122 = vadd.f32 %v116, 2.6326788e-05
    %v123 = vmul.f32 %v117, %v105
    %v124 = vmul.f32 %v118, %v106
    %v125 = vmul.f32 %v119, %v107
    %v126 = vmul.f32 %v120, %v108
    %v127 = vmul.f32 %v121, %v109
    %v128 = vmul.f32 %v122, %v110
    %v129 = vadd.f32 %v123, -0.0002508986
    %v130 = vadd.f32 %v124, -0.0002508986
    %v131 = vadd.f32 %v125, -0.0002508986
    %v132 = vadd.f32 %v126, -0.0002508986
    %v133 = vadd.f32 %v127, -0.0002508986
    %v134 = vadd.f32 %v128, -0.0002508986
    %v135 = vmul.f32 %v129, %v105
    %v136 = vmul.f32 %v130, %v106
    %v137 = vmul.f32 %v131, %v107
    %v138 = vmul.f32 %v132, %v108
    %v139 = vmul.f32 %v133, %v109
    %v140 = vmul.f32 %v134, %v110
    %v141 = vadd.f32 %v135, -0.00119867
    %v142 = vadd.f32 %v136, -0.00119867
    %v143 = vadd.f32 %v137, -0.00119867
    %v144 = vadd.f32 %v138, -0.00119867
    %v145 = vadd.f32 %v139, -0.00119867
    %v146 = vadd.f32 %v140, -0.00119867
    %v147 = vmul.f32 %v141, %v105
    %v148 = vmul.f32 %v142, %v106
    %v149 = vmul.f32 %v143, %v107
    %v150 = vmul.f32 %v144, %v108
    %v151 = vmul.f32 %v145, %v109
    %v152 = vmul.f32 %v146, %v110
    %v153 = vadd.f32 %v147, 0.029375458
    %v154 = vadd.f32 %v148, 0.029375458
    %v155 = vadd.f32 %v149, 0.029375458
    %v156 = vadd.f32 %v150, 0.029375458
    %v157 = vadd.f32 %v151, 0.029375458
    %v158 = vadd.f32 %v152, 0.029375458
    %v159 = vmul.f32 %v153, %v105
    %v160 = vmul.f32 %v154, %v106
    %v161 = vmul.f32 %v155, %v107
    %v162 = vmul.f32 %v156, %v108
    %v163 = vmul.f32 %v157, %v109
    %v164 = vmul.f32 %v158, %v110
    %v165 = vadd.f32 %v159, -0.18877038
    %v166 = vadd.f32 %v160, -0.18877038
    %v167 = vadd.f32 %v161, -0.18877038
    %v168 = vadd.f32 %v162, -0.18877038
    %v169 = vadd.f32 %v163, -0.18877038
    %v170 = vadd.f32 %v164, -0.18877038
    %v171 = vmul.f32 %v165, %v105
    %v172 = vmul.f32 %v166, %v106
    %v173 = vmul.f32 %v167, %v107
    %v174 = vmul.f32 %v168, %v108
    %v175 = vmul.f32 %v169, %v109
    %v176 = vmul.f32 %v170, %v110
    %v177 = vadd.f32 %v171, 0.474077
    %v178 = vadd.f32 %v172, 0.474077
    %v179 = vadd.f32 %v173, 0.474077
    %v180 = vadd.f32 %v174, 0.474077
    %v181 = vadd.f32 %v175, 0.474077
    %v182 = vadd.f32 %v176, 0.474077
    %v183 = vadd.f32 %v93, %v177
    %v184 = vadd.f32 %v94, %v178
    %v185 = vadd.f32 %v95, %v179
    %v186 = vadd.f32 %v96, %v180
    %v187 = vadd.f32 %v97, %v181
    %v188 = vadd.f32 %v98, %v182
    %v189 = vmul.f32 %v76, %v45
    %v190 = vmul.f32 %v78, %v46
    %v191 = vmul.f32 %v80, %v47
    %v192 = vmul.f32 %v82, %v48
    %v193 = vmul.f32 %v84, %v49
    %v194 = vmul.f32 %v86, %v50
    %vm195 = vcmask 1041408
    %v196 = vsel %vm195, %v189, 0.0
    %v197 = vrot.slane %v196, 4
    %v198 = vadd.f32 %v196, %v197
    %v199 = vrot.slane %v198, 2
    %v200 = vadd.f32 %v198, %v199
    %v201 = vrot.slane %v200, 1
    %v202 = vadd.f32 %v200, %v201
    %v203 = vsel %vm195, %v190, 0.0
    %v204 = vrot.slane %v203, 4
    %v205 = vadd.f32 %v203, %v204
    %v206 = vrot.slane %v205, 2
    %v207 = vadd.f32 %v205, %v206
    %v208 = vrot.slane %v207, 1
    %v209 = vadd.f32 %v207, %v208
    %v210 = vsel %vm195, %v191, 0.0
    %v211 = vrot.slane %v210, 4
    %v212 = vadd.f32 %v210, %v211
    %v213 = vrot.slane %v212, 2
    %v214 = vadd.f32 %v212, %v213
    %v215 = vrot.slane %v214, 1
    %v216 = vadd.f32 %v214, %v215
    %v217 = vsel %vm195, %v192, 0.0
    %v218 = vrot.slane %v217, 4
    %v219 = vadd.f32 %v217, %v218
    %v220 = vrot.slane %v219, 2
    %v221 = vadd.f32 %v219, %v220
    %v222 = vrot.slane %v221, 1
    %v223 = vadd.f32 %v221, %v222
    %v224 = vsel %vm195, %v193, 0.0
    %v225 = vrot.slane %v224, 4
    %v226 = vadd.f32 %v224, %v225
    %v227 = vrot.slane %v226, 2
    %v228 = vadd.f32 %v226, %v227
    %v229 = vrot.slane %v228, 1
    %v230 = vadd.f32 %v228, %v229
    %v231 = vsel %vm195, %v194, 0.0
    %v232 = vrot.slane %v231, 4
    %v233 = vadd.f32 %v231, %v232
    %v234 = vrot.slane %v233, 2
    %v235 = vadd.f32 %v233, %v234
    %v236 = vrot.slane %v235, 1
    %v237 = vadd.f32 %v235, %v236
    %vm244 = vcmask 1041409
    %v245 = vsel %vm244, %v209, %v202
    %vm246 = vcmask 1042434
    %v247 = vsel %vm246, %v216, %v245
    %v248 = vsel %vm244, %v230, %v223
    %v249 = vsel %vm246, %v237, %v248
    %252 = vst [vmem:[%s2] sm:$0x7] %v247
    %253 = vst [vmem:[%s2 + $0x10] sm:$0x7] %v249
    %v254 = vmul.f32 %v76, %v76
    %v255 = vmul.f32 %v78, %v78
    %v256 = vmul.f32 %v80, %v80
    %v257 = vmul.f32 %v82, %v82
    %v258 = vmul.f32 %v84, %v84
    %v259 = vmul.f32 %v86, %v86
    %v260 = vsel %vm195, %v254, 0.0
    %v261 = vrot.slane %v260, 4
    %v262 = vadd.f32 %v260, %v261
    %v263 = vrot.slane %v262, 2
    %v264 = vadd.f32 %v262, %v263
    %v265 = vrot.slane %v264, 1
    %v266 = vadd.f32 %v264, %v265
    %v267 = vsel %vm195, %v255, 0.0
    %v268 = vrot.slane %v267, 4
    %v269 = vadd.f32 %v267, %v268
    %v270 = vrot.slane %v269, 2
    %v271 = vadd.f32 %v269, %v270
    %v272 = vrot.slane %v271, 1
    %v273 = vadd.f32 %v271, %v272
    %v274 = vsel %vm195, %v256, 0.0
    %v275 = vrot.slane %v274, 4
    %v276 = vadd.f32 %v274, %v275
    %v277 = vrot.slane %v276, 2
    %v278 = vadd.f32 %v276, %v277
    %v279 = vrot.slane %v278, 1
    %v280 = vadd.f32 %v278, %v279
    %v281 = vsel %vm195, %v257, 0.0
    %v282 = vrot.slane %v281, 4
    %v283 = vadd.f32 %v281, %v282
    %v284 = vrot.slane %v283, 2
    %v285 = vadd.f32 %v283, %v284
    %v286 = vrot.slane %v285, 1
    %v287 = vadd.f32 %v285, %v286
    %v288 = vsel %vm195, %v258, 0.0
    %v289 = vrot.slane %v288, 4
    %v290 = vadd.f32 %v288, %v289
    %v291 = vrot.slane %v290, 2
    %v292 = vadd.f32 %v290, %v291
    %v293 = vrot.slane %v292, 1
    %v294 = vadd.f32 %v292, %v293
    %v295 = vsel %vm195, %v259, 0.0
    %v296 = vrot.slane %v295, 4
    %v297 = vadd.f32 %v295, %v296
    %v298 = vrot.slane %v297, 2
    %v299 = vadd.f32 %v297, %v298
    %v300 = vrot.slane %v299, 1
    %v301 = vadd.f32 %v299, %v300
    %v308 = vsel %vm244, %v273, %v266
    %v309 = vsel %vm246, %v280, %v308
    %v310 = vsel %vm244, %v294, %v287
    %v311 = vsel %vm246, %v301, %v310
    %s314 = scalar_lea.vmem %s2, 4
    %315 = vst [vmem:[%s314] sm:$0x7] %v309
    %316 = vst [vmem:[%s314 + $0x10] sm:$0x7] %v311
    %v317 = vmul.f32 %v45, %v45
    %v318 = vmul.f32 %v46, %v46
    %v319 = vmul.f32 %v47, %v47
    %v320 = vmul.f32 %v48, %v48
    %v321 = vmul.f32 %v49, %v49
    %v322 = vmul.f32 %v50, %v50
    %v323 = vsel %vm195, %v317, 0.0
    %v324 = vrot.slane %v323, 4
    %v325 = vadd.f32 %v323, %v324
    %v326 = vrot.slane %v325, 2
    %v327 = vadd.f32 %v325, %v326
    %v328 = vrot.slane %v327, 1
    %v329 = vadd.f32 %v327, %v328
    %v330 = vsel %vm195, %v318, 0.0
    %v331 = vrot.slane %v330, 4
    %v332 = vadd.f32 %v330, %v331
    %v333 = vrot.slane %v332, 2
    %v334 = vadd.f32 %v332, %v333
    %v335 = vrot.slane %v334, 1
    %v336 = vadd.f32 %v334, %v335
    %v337 = vsel %vm195, %v319, 0.0
    %v338 = vrot.slane %v337, 4
    %v339 = vadd.f32 %v337, %v338
    %v340 = vrot.slane %v339, 2
    %v341 = vadd.f32 %v339, %v340
    %v342 = vrot.slane %v341, 1
    %v343 = vadd.f32 %v341, %v342
    %v344 = vsel %vm195, %v320, 0.0
    %v345 = vrot.slane %v344, 4
    %v346 = vadd.f32 %v344, %v345
    %v347 = vrot.slane %v346, 2
    %v348 = vadd.f32 %v346, %v347
    %v349 = vrot.slane %v348, 1
    %v350 = vadd.f32 %v348, %v349
    %v351 = vsel %vm195, %v321, 0.0
    %v352 = vrot.slane %v351, 4
    %v353 = vadd.f32 %v351, %v352
    %v354 = vrot.slane %v353, 2
    %v355 = vadd.f32 %v353, %v354
    %v356 = vrot.slane %v355, 1
    %v357 = vadd.f32 %v355, %v356
    %v358 = vsel %vm195, %v322, 0.0
    %v359 = vrot.slane %v358, 4
    %v360 = vadd.f32 %v358, %v359
    %v361 = vrot.slane %v360, 2
    %v362 = vadd.f32 %v360, %v361
    %v363 = vrot.slane %v362, 1
    %v364 = vadd.f32 %v362, %v363
    %v371 = vsel %vm244, %v336, %v329
    %v372 = vsel %vm246, %v343, %v371
    %v373 = vsel %vm244, %v357, %v350
    %v374 = vsel %vm246, %v364, %v373
    %s377 = scalar_lea.vmem %s2, 8
    %378 = vst [vmem:[%s377] sm:$0x7] %v372
    %379 = vst [vmem:[%s377 + $0x10] sm:$0x7] %v374
    %v380 = vsel %vm195, %v183, 0.0
    %v381 = vrot.slane %v380, 4
    %v382 = vadd.f32 %v380, %v381
    %v383 = vrot.slane %v382, 2
    %v384 = vadd.f32 %v382, %v383
    %v385 = vrot.slane %v384, 1
    %v386 = vadd.f32 %v384, %v385
    %v387 = vsel %vm195, %v184, 0.0
    %v388 = vrot.slane %v387, 4
    %v389 = vadd.f32 %v387, %v388
    %v390 = vrot.slane %v389, 2
    %v391 = vadd.f32 %v389, %v390
    %v392 = vrot.slane %v391, 1
    %v393 = vadd.f32 %v391, %v392
    %v394 = vsel %vm195, %v185, 0.0
    %v395 = vrot.slane %v394, 4
    %v396 = vadd.f32 %v394, %v395
    %v397 = vrot.slane %v396, 2
    %v398 = vadd.f32 %v396, %v397
    %v399 = vrot.slane %v398, 1
    %v400 = vadd.f32 %v398, %v399
    %v401 = vsel %vm195, %v186, 0.0
    %v402 = vrot.slane %v401, 4
    %v403 = vadd.f32 %v401, %v402
    %v404 = vrot.slane %v403, 2
    %v405 = vadd.f32 %v403, %v404
    %v406 = vrot.slane %v405, 1
    %v407 = vadd.f32 %v405, %v406
    %v408 = vsel %vm195, %v187, 0.0
    %v409 = vrot.slane %v408, 4
    %v410 = vadd.f32 %v408, %v409
    %v411 = vrot.slane %v410, 2
    %v412 = vadd.f32 %v410, %v411
    %v413 = vrot.slane %v412, 1
    %v414 = vadd.f32 %v412, %v413
    %v415 = vsel %vm195, %v188, 0.0
    %v416 = vrot.slane %v415, 4
    %v417 = vadd.f32 %v415, %v416
    %v418 = vrot.slane %v417, 2
    %v419 = vadd.f32 %v417, %v418
    %v420 = vrot.slane %v419, 1
    %v421 = vadd.f32 %v419, %v420
    %v428 = vsel %vm244, %v393, %v386
    %v429 = vsel %vm246, %v400, %v428
    %v430 = vsel %vm244, %v414, %v407
    %v431 = vsel %vm246, %v421, %v430
    %s434 = scalar_lea.vmem %s2, 12
    %435 = vst [vmem:[%s434] sm:$0x7] %v429
    %436 = vst [vmem:[%s434 + $0x10] sm:$0x7] %v431
    // Predicated region
    $region18: #{tpu_custom_call.1} parent=1 // pred_check
      _
    $region19: #{tpu_custom_call.1} parent=1 // pred_check_branch
      %438 = sbr.rel (0) target = $region21
    $region20: #{tpu_custom_call.1} parent=1 // pred_region
      _
    $region21: #{tpu_custom_call.1} parent=1 // pred_fallthru
      _
    // Predicated region
    $region22: #{tpu_custom_call.1} parent=1 // pred_check
      _
    $region23: #{tpu_custom_call.1} parent=1 // pred_check_branch
      %440 = sbr.rel (0) target = $region25
    $region24: #{tpu_custom_call.1} parent=1 // pred_region
      _
    $region25: #{tpu_custom_call.1} parent=1 // pred_fallthru
      _
    %441 = vsyncpa [#allocation3], 1
    %442 = vsyncpa [#allocation5], 1

</llo_original>
